<compile_context>
chip_gen: v7x
topology: tpu7x:2x2x1
jax: 0.10.0
libtpu: 0.0.40
codegen_flags: <defaults>
</compile_context>

<pallas_src>
import jax
import jax.numpy as jnp
from jax.experimental import pallas as pl
from jax.experimental.pallas import tpu as pltpu


# ---------------------------------------------------------------------------
# Pallas pass-through kernel: direct HBM -> HBM DMA (no VMEM staging)
# ---------------------------------------------------------------------------

_MAX_DMA_CHUNKS = 4          # issue at most this many concurrent DMAs
_CHUNK_MIN_BYTES = 1 << 20   # only bother splitting tensors >= 1 MiB


def _make_copy_kernel(num_chunks, rows_per_chunk, last_chunk_rows):
    """Build a kernel that copies the whole input HBM ref to the output HBM
    ref using `num_chunks` concurrent DMAs split along the leading axis."""

    def kernel(x_hbm, o_hbm, sems):
        copies = []
        for c in range(num_chunks):
            if num_chunks == 1:
                cp = pltpu.make_async_copy(x_hbm, o_hbm, sems.at[c])
            else:
                start = c * rows_per_chunk
                size = last_chunk_rows if c == num_chunks - 1 else rows_per_chunk
                cp = pltpu.make_async_copy(
                    x_hbm.at[pl.ds(start, size)],
                    o_hbm.at[pl.ds(start, size)],
                    sems.at[c],
                )
            cp.start()
            copies.append(cp)
        # All DMAs are in flight; now block until every one has landed.
        for cp in copies:
            cp.wait()

    return kernel


@jax.jit
def _pallas_passthrough(x):
    """Copy one tensor through a direct HBM->HBM DMA (fresh output buffer)."""
    if x.size == 0 or x.ndim == 0:
        # Nothing to DMA; returning the (immutable) input is exact.
        return x

    rows = x.shape[0]
    nbytes = x.size * x.dtype.itemsize

    # Static (trace-time) chunking decision: split big tensors along the
    # leading axis into a few concurrent DMAs; small tensors use a single DMA.
    if nbytes >= _CHUNK_MIN_BYTES and rows >= 2:
        want = min(_MAX_DMA_CHUNKS, rows)
    else:
        want = 1
    rows_per_chunk = -(-rows // want)                    # ceil div
    num_chunks = -(-rows // rows_per_chunk)              # actual chunk count
    last_chunk_rows = rows - (num_chunks - 1) * rows_per_chunk

    return pl.pallas_call(
        _make_copy_kernel(num_chunks, rows_per_chunk, last_chunk_rows),
        out_shape=jax.ShapeDtypeStruct(x.shape, x.dtype),
        in_specs=[pl.BlockSpec(memory_space=pl.ANY)],    # raw HBM ref, no auto-DMA
        out_specs=pl.BlockSpec(memory_space=pl.ANY),     # raw HBM ref, no auto-DMA
        scratch_shapes=[pltpu.SemaphoreType.DMA((num_chunks,))],
    )(x)


# ---------------------------------------------------------------------------
# Module wrapper (interface parity with the PyTorch VMModule container)
# ---------------------------------------------------------------------------

class VMModule:
    """JAX/Pallas analogue of the PyTorch VMModule container.

    Mirrors __init__(num_inputs, num_outputs) and forward(inputs) -> outputs.
    """

    def __init__(self, num_inputs, num_outputs, device=None):
        self.num_inputs = num_inputs
        self.num_outputs = num_outputs
        # dummy_param analogue (torch.nn.Parameter(torch.empty(0)))
        self.dummy_param = jnp.zeros((0,), dtype=jnp.float32)
        # TODO(synk): the real TvmVMModule engine runs an opaque TVM-compiled
        # graph loaded from lib_path/code_path; only its tensor-list in/out
        # (pass-through, fresh-output-buffer) interface is reproduced here.
        self.engine = None

    @classmethod
    def shape_repr(cls, input_shapes):
        # tvm_dsoop.tvm_shape_repr builds a string key from the shapes.
        return ";".join(
            ",".join(str(int(d)) for d in shp) for shp in input_shapes
        )

    def init(self, input_shapes, lib_path=None, code_path=None):
        # TODO(synk): no TVM module/bytecode to load; interface kept for parity.
        self._input_shapes = input_shapes

    def forward(self, inputs):
        assert len(inputs) == self.num_inputs, (
            f"expected {self.num_inputs} inputs, got {len(inputs)}"
        )
        outputs = []
        for i in range(self.num_outputs):
            x = inputs[i % self.num_inputs]
            # Every output is a distinct, freshly-allocated buffer (as the TVM
            # engine would return), produced by a direct HBM->HBM DMA copy.
            outputs.append(_pallas_passthrough(x))
        return outputs

    def __call__(self, inputs):
        return self.forward(inputs)

    @property
    def device(self):
        return str(jax.devices()[0])


# ---------------------------------------------------------------------------
# Demo / self-test
# ---------------------------------------------------------------------------

if __name__ == "__main__":
    key = jax.random.PRNGKey(0)
    k0, k1, k2 = jax.random.split(key, 3)

    # Small NCHW activation and 2-D "hidden" tensor (single-DMA path), plus a
    # ~3 MiB activation that exercises the multi-chunk concurrent-DMA path
    # (leading dim 3 -> 3 DMAs) with a shape that is NOT a multiple of the
    # (8, 128) vreg tile, which the HBM->HBM DMA handles without padding.
    x0 = jax.random.normal(k0, (2, 4, 16, 16), dtype=jnp.float32)   # 8 KiB
    x1 = jax.random.normal(k1, (8, 32), dtype=jnp.float32)          # 1 KiB
    x2 = jax.random.normal(k2, (3, 64, 63, 65), dtype=jnp.float32)  # ~3 MiB

    module = VMModule(num_inputs=3, num_outputs=3)
    module.init([x0.shape, x1.shape, x2.shape])

    outs = module([x0, x1, x2])
    outs = [jax.block_until_ready(o) for o in outs]

    # Pass-through semantics: outputs must equal the corresponding inputs.
    for inp, out in zip([x0, x1, x2], outs):
        assert out.shape == inp.shape and out.dtype == inp.dtype
        assert bool(jnp.array_equal(out, inp))

    print("KERNEL_OK")
</pallas_src>

<mosaic_0001>
module attributes {stable_mosaic.version = 11 : i64} {
  func.func @kernel(%arg0: memref<2x4x16x16xf32, #tpu.memory_space<any>>, %arg1: memref<2x4x16x16xf32, #tpu.memory_space<any>>, %arg2: memref<1x!tpu.dma_semaphore, #tpu.memory_space<semaphore_mem>>) attributes {dimension_semantics = [], scalar_prefetch = 0 : i64, scratch_operands = 1 : i64, tpu.core_type = #tpu.core_type<tc>} {
    %c0_i32 = arith.constant 0 : i32
    %0 = tpu.memref_slice %arg2[%c0_i32] : memref<1x!tpu.dma_semaphore, #tpu.memory_space<semaphore_mem>> -> memref<1x!tpu.dma_semaphore, #tpu.memory_space<semaphore_mem>>
    %1 = tpu.memref_squeeze %0 : memref<1x!tpu.dma_semaphore, #tpu.memory_space<semaphore_mem>> -> memref<!tpu.dma_semaphore, #tpu.memory_space<semaphore_mem>>
    tpu.enqueue_dma source(%arg0 : memref<2x4x16x16xf32, #tpu.memory_space<any>>) target(%arg1 : memref<2x4x16x16xf32, #tpu.memory_space<any>>) target_semaphore(%1 : memref<!tpu.dma_semaphore, #tpu.memory_space<semaphore_mem>>)
    %c0_i32_0 = arith.constant 0 : i32
    %2 = tpu.memref_slice %arg2[%c0_i32_0] : memref<1x!tpu.dma_semaphore, #tpu.memory_space<semaphore_mem>> -> memref<1x!tpu.dma_semaphore, #tpu.memory_space<semaphore_mem>>
    %3 = tpu.memref_squeeze %2 : memref<1x!tpu.dma_semaphore, #tpu.memory_space<semaphore_mem>> -> memref<!tpu.dma_semaphore, #tpu.memory_space<semaphore_mem>>
    tpu.wait_dma2 semaphore(%3 : memref<!tpu.dma_semaphore, #tpu.memory_space<semaphore_mem>>) src(%arg0 : memref<2x4x16x16xf32, #tpu.memory_space<any>>) dst(%arg1 : memref<2x4x16x16xf32, #tpu.memory_space<any>>)
    return
  }
}

</mosaic_0001>

<llo_original>
// kernel: _pallas_passthrough.1
$region0: #{_pallas_passthrough.1}
  #allocation0 [shape = 'u32[]', space=smem, size = 0x4, offset = 0x4, fixed_abs, tag = 'smem constant byte address 0x4 - core index']
  #allocation1 [shape = 'u32[144,128]{1,0:T(1,128)}', space=vmem, size = 0x12000, scoped, tag = 'internal scratch']
  #allocation2 [shape = 's32[1]{0}', space=sflag, size = 0x4, scoped, tag = 'scratch operand']
  #allocation3 [shape = 's32[]', space=sflag, size = 0x4, offset = 0, fixed_abs, tag = 'sflag constant byte address 0x0 - dummy sync flag']
  #allocation4 [shape = 'u32[0]{0}', space=smem, size = 0, offset = 0, fixed_abs, tag = 'smem constant byte address 0x0 - null']
  %s0 = inlined_call_operand.hbm [shape: f32[2,4,16,16], index: 0, kind: input, shape index: {}]
  %s1 = inlined_call_operand.hbm [shape: f32[2,4,16,16], index: 1, kind: output, shape index: {}]
  %s2 = sld [smem:[#allocation0]]
  $region2: #{_pallas_passthrough.1} parent=0
    _
  %s4 = ssub.s32 1, %s2
  %s5 = scalar_select 0, %s4, %s2
  %s7 = sshll.u32 1, 14
  %s8 = sxor.u32 4294967295, %s7
  %s11 = sshll.u32 3, 24
  %s12 = sxor.u32 4294967295, %s11
  %s13 = sand.u32 0, %s12
  %s15 = sor.u32 %s13, 0
  %18 = dma.general %s0, 2048, %s1, [#allocation2], [#allocation3], [#allocation4], %s15, 0
  %s19 = smul.u32 2, 4
  %s20 = smul.u32 %s19, 16
  %s21 = smul.u32 %s20, 1
  %s22 = sshll.u32 %s21, 4
  %23 = dma.done [#allocation2], %s22
  %24 = vsyncmov [#allocation2]
  %s25 = vpop.sfrf %24
  %p26 = scmp.eq.s32.totalorder %s25, 0
  %p27 = pneg %p26
  %29 = shalt.err (%p27)

</llo_original>
